<compile_context>
chip_gen: v5e
topology: v5e:2x2
jax: 0.10.0
libtpu: 0.0.40
codegen_flags: <defaults>
</compile_context>

<pallas_src>
import functools

import jax
import jax.numpy as jnp
from jax.experimental import pallas as pl
from jax.experimental.pallas import tpu as pltpu


def _round_up(x, m):
    return ((x + m - 1) // m) * m


def _pick_batch_tile(b_pad128, tb_max):
    """Largest multiple of 128 that divides b_pad128, is <= tb_max, and keeps
    at least 2 grid steps when the batch spans >= 2 lane tiles (v7x megacore)."""
    units = b_pad128 // 128
    max_units = max(1, tb_max // 128)
    if units >= 2:
        max_units = min(max_units, units // 2)   # guarantee >= 2 grid steps
    max_units = min(max_units, units)
    tb_units = max(d for d in range(1, max_units + 1) if units % d == 0)
    return tb_units * 128


def critic_kernel(x_ref, w1_ref, b1_ref, w2_ref, b2_ref, w3_ref, b3_ref, o_ref,
                  *, bf16_epilogue):
    # x_ref : (TB, F) f32        -- streamed activations (batch on sublanes in HBM)
    # w1_ref: (H, F)  bf16, w2_ref: (H, H) bf16   (PyTorch (out, in) layout)
    # b1_ref/b2_ref/w3_ref: (H, 1) f32 ; b3_ref: (1,) f32 in SMEM
    # o_ref : (1, TB) f32        -- lane-dense output row (batch on lanes)
    cd = w1_ref.dtype
    f32 = jnp.float32

    x = x_ref[...].astype(cd)                                     # (TB, F) bf16

    # Layer 1: contract both minor dims -> (H, TB); transpose is absorbed into
    # the MXU operand feed, f32 accumulation.
    z1 = jax.lax.dot_general(
        w1_ref[...], x, (((1,), (1,)), ((), ())),
        preferred_element_type=f32) + b1_ref[...]
    h1 = jnp.tanh(z1.astype(jnp.bfloat16) if bf16_epilogue else z1)

    # Layer 2: (H, H) @ (H, TB) -> (H, TB).
    z2 = jnp.dot(w2_ref[...], h1.astype(cd),
                 preferred_element_type=f32) + b2_ref[...]
    h2 = jnp.tanh(z2.astype(jnp.bfloat16) if bf16_epilogue else z2).astype(f32)

    # Head (out_features == 1): VPU multiply + sublane (XLU) reduce instead of
    # a nearly-empty MXU matmul; result stays lane-major -> lane-dense store.
    v = jnp.sum(h2 * w3_ref[...], axis=0, keepdims=True) + b3_ref[0]  # (1, TB)
    o_ref[...] = v.astype(o_ref.dtype)


def critic_forward(state, params, *, compute_dtype=jnp.bfloat16, tb_max=4096,
                   bf16_epilogue=False):
    """state: (B, num_inputs) f32; params in PyTorch layout (W: (out,in), b: (out,)).

    Returns (B, 1) f32, matching CriticNetwork.forward.
    """
    w1, b1, w2, b2, w3, b3 = params
    f32 = jnp.float32

    B, F = state.shape
    H = w1.shape[0]

    tb_max = max(128, _round_up(int(tb_max), 128))     # keep lane-dim legality
    B_pad = _round_up(B, 128)
    TB = _pick_batch_tile(B_pad, tb_max)
    G = B_pad // TB

    # --- layout plumbing (weights are tiny; no hidden-dim padding) ----------
    w1c = w1.astype(compute_dtype)                     # (H, F)
    w2c = w2.astype(compute_dtype)                     # (H, H)
    b1c = b1.reshape(H, 1).astype(f32)
    b2c = b2.reshape(H, 1).astype(f32)
    w3c = w3.reshape(H, 1).astype(f32)                 # head weights as a column
    b3c = b3.reshape(1).astype(f32)                    # scalar via SMEM

    # Activations are streamed as-is (f32); only pad when B % TB != 0.
    x_in = state if B_pad == B else jnp.pad(state, ((0, B_pad - B), (0, 0)))

    cost = pl.CostEstimate(
        flops=int(2 * B_pad * (F * H + H * H + H)),
        transcendentals=int(2 * B_pad * H),
        bytes_accessed=int(B_pad * F * 4 + B_pad * 4
                           + (w1.size + w2.size) * 2 + (3 * H + 1) * 4),
    )

    out_t = pl.pallas_call(
        functools.partial(critic_kernel, bf16_epilogue=bf16_epilogue),
        out_shape=jax.ShapeDtypeStruct((1, B_pad), f32),
        grid=(G,),
        in_specs=[
            pl.BlockSpec((TB, F), lambda i: (i, 0)),          # state: tiled over batch
            pl.BlockSpec((H, F), lambda i: (0, 0)),           # w1: VMEM-resident
            pl.BlockSpec((H, 1), lambda i: (0, 0)),           # b1
            pl.BlockSpec((H, H), lambda i: (0, 0)),           # w2
            pl.BlockSpec((H, 1), lambda i: (0, 0)),           # b2
            pl.BlockSpec((H, 1), lambda i: (0, 0)),           # w3 (column)
            pl.BlockSpec(memory_space=pltpu.MemorySpace.SMEM),  # b3 scalar
        ],
        out_specs=pl.BlockSpec((1, TB), lambda i: (0, i)),    # lane-dense output row
        compiler_params=pltpu.CompilerParams(
            dimension_semantics=("parallel",)),               # megacore on v7x
        cost_estimate=cost,
    )(x_in, w1c, b1c, w2c, b2c, w3c, b3c)

    return out_t[0, :B].reshape(B, 1)


def reference_forward(state, params, compute_dtype=jnp.bfloat16):
    """Pure-JAX reference mimicking the kernel's bf16-matmul / f32-accumulate math."""
    w1, b1, w2, b2, w3, b3 = params
    f32 = jnp.float32
    cd = compute_dtype
    h1 = jnp.tanh(jnp.dot(state.astype(cd), w1.T.astype(cd),
                          preferred_element_type=f32) + b1.astype(f32))
    h2 = jnp.tanh(jnp.dot(h1.astype(cd), w2.T.astype(cd),
                          preferred_element_type=f32) + b2.astype(f32))
    return jnp.sum(h2 * w3.astype(f32), axis=-1, keepdims=True) + b3.astype(f32)


def init_params(key, num_inputs, hidden_dim):
    """Deterministic init mimicking nn.Linear's U(-1/sqrt(fan_in), 1/sqrt(fan_in)).

    PyTorch layout: W (out_features, in_features), b (out_features,).
    """
    ks = jax.random.split(key, 6)

    def linear(kw, kb, fan_in, fan_out):
        bound = float(fan_in) ** -0.5
        w = jax.random.uniform(kw, (fan_out, fan_in), jnp.float32, -bound, bound)
        b = jax.random.uniform(kb, (fan_out,), jnp.float32, -bound, bound)
        return w, b

    w1, b1 = linear(ks[0], ks[1], num_inputs, hidden_dim)
    w2, b2 = linear(ks[2], ks[3], hidden_dim, hidden_dim)
    w3, b3 = linear(ks[4], ks[5], hidden_dim, 1)
    return (w1, b1, w2, b2, w3, b3)


if __name__ == "__main__":
    key = jax.random.PRNGKey(0)
    k_state, k_params = jax.random.split(key)

    batch = 8
    num_inputs = 16
    hidden_dim = 32

    state = jax.random.normal(k_state, (batch, num_inputs), jnp.float32)
    params = init_params(k_params, num_inputs, hidden_dim)

    critic_fn = jax.jit(critic_forward)
    out = jax.block_until_ready(critic_fn(state, params))

    ref = reference_forward(state, params)

    assert out.shape == (batch, 1), out.shape
    assert jnp.allclose(out, ref, atol=2e-3, rtol=2e-3), "mismatch vs reference"

    print("KERNEL_OK")
</pallas_src>

<mosaic_0001>
module attributes {stable_mosaic.version = 11 : i64} {
  func.func @critic_kernel(%arg0: i32, %arg1: memref<128x16xf32, #tpu.memory_space<vmem>>, %arg2: memref<32x16xbf16, #tpu.memory_space<vmem>>, %arg3: memref<32x1xf32, #tpu.memory_space<vmem>>, %arg4: memref<32x32xbf16, #tpu.memory_space<vmem>>, %arg5: memref<32x1xf32, #tpu.memory_space<vmem>>, %arg6: memref<32x1xf32, #tpu.memory_space<vmem>>, %arg7: memref<1xf32, #tpu.memory_space<smem>>, %arg8: memref<1x128xf32, #tpu.memory_space<vmem>>) attributes {dimension_semantics = [#tpu.dimension_semantics<parallel>], iteration_bounds = array<i64: 1>, scalar_prefetch = 0 : i64, scratch_operands = 0 : i64, tpu.core_type = #tpu.core_type<tc>, window_params = [{transform_indices = @transform_0, window_bounds = array<i64: 128, 16>}, {pipeline_mode = #tpu.pipeline_mode<synchronous>, transform_indices = @transform_1, window_bounds = array<i64: 32, 16>}, {pipeline_mode = #tpu.pipeline_mode<synchronous>, transform_indices = @transform_2, window_bounds = array<i64: 32, 1>}, {pipeline_mode = #tpu.pipeline_mode<synchronous>, transform_indices = @transform_3, window_bounds = array<i64: 32, 32>}, {pipeline_mode = #tpu.pipeline_mode<synchronous>, transform_indices = @transform_4, window_bounds = array<i64: 32, 1>}, {pipeline_mode = #tpu.pipeline_mode<synchronous>, transform_indices = @transform_5, window_bounds = array<i64: 32, 1>}, {transform_indices = @transform_6, window_bounds = array<i64: 1>}, {transform_indices = @transform_7, window_bounds = array<i64: 1, 128>}]} {
    %c0 = arith.constant 0 : index
    %c0_0 = arith.constant 0 : index
    %0 = vector.load %arg1[%c0, %c0_0] : memref<128x16xf32, #tpu.memory_space<vmem>>, vector<128x16xf32>
    %1 = arith.truncf %0 : vector<128x16xf32> to vector<128x16xbf16>
    %c0_1 = arith.constant 0 : index
    %c0_2 = arith.constant 0 : index
    %2 = vector.load %arg2[%c0_1, %c0_2] : memref<32x16xbf16, #tpu.memory_space<vmem>>, vector<32x16xbf16>
    %cst = arith.constant dense<0.000000e+00> : vector<32x128xf32>
    %3 = tpu.matmul %2, %1, %cst {dimension_numbers = #tpu.dot_dimension_numbers<[1], [1], [0], [0], [0, 0, 1, 0], [], []>} : vector<32x16xbf16>, vector<128x16xbf16>, vector<32x128xf32> -> vector<32x128xf32>
    %c0_3 = arith.constant 0 : index
    %c0_4 = arith.constant 0 : index
    %4 = vector.load %arg3[%c0_3, %c0_4] : memref<32x1xf32, #tpu.memory_space<vmem>>, vector<32x1xf32>
    %5 = vector.broadcast %4 : vector<32x1xf32> to vector<32x128xf32>
    %6 = arith.addf %3, %5 : vector<32x128xf32>
    %7 = math.tanh %6 : vector<32x128xf32>
    %c0_5 = arith.constant 0 : index
    %c0_6 = arith.constant 0 : index
    %8 = vector.load %arg4[%c0_5, %c0_6] : memref<32x32xbf16, #tpu.memory_space<vmem>>, vector<32x32xbf16>
    %9 = arith.truncf %7 : vector<32x128xf32> to vector<32x128xbf16>
    %cst_7 = arith.constant dense<0.000000e+00> : vector<32x128xf32>
    %10 = tpu.matmul %8, %9, %cst_7 {dimension_numbers = #tpu.dot_dimension_numbers<[1], [0], [0], [1], [0, 0, 1, 1], [], []>} : vector<32x32xbf16>, vector<32x128xbf16>, vector<32x128xf32> -> vector<32x128xf32>
    %c0_8 = arith.constant 0 : index
    %c0_9 = arith.constant 0 : index
    %11 = vector.load %arg5[%c0_8, %c0_9] : memref<32x1xf32, #tpu.memory_space<vmem>>, vector<32x1xf32>
    %12 = vector.broadcast %11 : vector<32x1xf32> to vector<32x128xf32>
    %13 = arith.addf %10, %12 : vector<32x128xf32>
    %14 = math.tanh %13 : vector<32x128xf32>
    %c0_10 = arith.constant 0 : index
    %c0_11 = arith.constant 0 : index
    %15 = vector.load %arg6[%c0_10, %c0_11] : memref<32x1xf32, #tpu.memory_space<vmem>>, vector<32x1xf32>
    %16 = vector.broadcast %15 : vector<32x1xf32> to vector<32x128xf32>
    %17 = arith.mulf %14, %16 : vector<32x128xf32>
    %cst_12 = arith.constant dense<0.000000e+00> : vector<128xf32>
    %18 = vector.multi_reduction <add>, %17, %cst_12 [0] : vector<32x128xf32> to vector<128xf32>
    %19 = vector.shape_cast %18 : vector<128xf32> to vector<1x128xf32>
    %c0_13 = arith.constant 0 : index
    %20 = memref.load %arg7[%c0_13] : memref<1xf32, #tpu.memory_space<smem>>
    %21 = vector.broadcast %20 : f32 to vector<1x128xf32>
    %22 = arith.addf %19, %21 : vector<1x128xf32>
    %c0_14 = arith.constant 0 : index
    %c0_15 = arith.constant 0 : index
    %23 = vector.load %arg8[%c0_14, %c0_15] : memref<1x128xf32, #tpu.memory_space<vmem>>, vector<1x128xf32>
    tpu.vector_store %arg8[%c0_14, %c0_15], %22 {strides = array<i32>} : memref<1x128xf32, #tpu.memory_space<vmem>>, vector<1x128xf32>,
    return
  }
  func.func @transform_0(%arg0: i32) -> (i32, i32) {
    %c0_i32 = arith.constant 0 : i32
    %c0_i32_0 = arith.constant 0 : i32
    return %arg0, %c0_i32 : i32, i32
  }
  func.func @transform_1(%arg0: i32) -> (i32, i32) {
    %c0_i32 = arith.constant 0 : i32
    %c0_i32_0 = arith.constant 0 : i32
    %c0_i32_1 = arith.constant 0 : i32
    return %c0_i32, %c0_i32_0 : i32, i32
  }
  func.func @transform_2(%arg0: i32) -> (i32, i32) {
    %c0_i32 = arith.constant 0 : i32
    %c0_i32_0 = arith.constant 0 : i32
    %c0_i32_1 = arith.constant 0 : i32
    return %c0_i32, %c0_i32_0 : i32, i32
  }
  func.func @transform_3(%arg0: i32) -> (i32, i32) {
    %c0_i32 = arith.constant 0 : i32
    %c0_i32_0 = arith.constant 0 : i32
    %c0_i32_1 = arith.constant 0 : i32
    return %c0_i32, %c0_i32_0 : i32, i32
  }
  func.func @transform_4(%arg0: i32) -> (i32, i32) {
    %c0_i32 = arith.constant 0 : i32
    %c0_i32_0 = arith.constant 0 : i32
    %c0_i32_1 = arith.constant 0 : i32
    return %c0_i32, %c0_i32_0 : i32, i32
  }
  func.func @transform_5(%arg0: i32) -> (i32, i32) {
    %c0_i32 = arith.constant 0 : i32
    %c0_i32_0 = arith.constant 0 : i32
    %c0_i32_1 = arith.constant 0 : i32
    return %c0_i32, %c0_i32_0 : i32, i32
  }
  func.func @transform_6(%arg0: i32) -> i32 {
    %c0_i32 = arith.constant 0 : i32
    %c0_i32_0 = arith.constant 0 : i32
    return %c0_i32 : i32
  }
  func.func @transform_7(%arg0: i32) -> (i32, i32) {
    %c0_i32 = arith.constant 0 : i32
    %c0_i32_0 = arith.constant 0 : i32
    return %c0_i32, %arg0 : i32, i32
  }
}

</mosaic_0001>

<llo_original>
// kernel: critic_forward.1
$region0: #{critic_forward.1}
  #allocation0 [shape = 'u32[]', space=smem, size = 0x4, offset = 0x4, fixed_abs, tag = 'smem constant byte address 0x4 - core index']
  #allocation1 [shape = 'u32[72,128]{1,0:T(1,128)}', space=vmem, size = 0x9000, scoped, tag = 'internal scratch']
  #allocation2 [shape = 'f32[1]{0:T(128)S(6)}', space=smem, size = 0x200, scoped, tag = 'scoped memory for critic_forward.1']
  %s0 = inlined_call_operand.vmem [shape: f32[128,16], index: 0, kind: input, shape index: {}]
  %s1 = inlined_call_operand.vmem [shape: bf16[32,16], index: 1, kind: input, shape index: {}]
  %s2 = inlined_call_operand.vmem [shape: f32[32,1], index: 2, kind: input, shape index: {}]
  %s3 = inlined_call_operand.vmem [shape: bf16[32,32], index: 3, kind: input, shape index: {}]
  %s4 = inlined_call_operand.vmem [shape: f32[32,1], index: 4, kind: input, shape index: {}]
  %s5 = inlined_call_operand.vmem [shape: f32[32,1], index: 5, kind: input, shape index: {}]
  %s6 = inlined_call_operand.<no memory space> [shape: f32[1], index: 6, kind: input, shape index: {}]
  %s7 = inlined_call_operand.vmem [shape: f32[1,128], index: 7, kind: output, shape index: {}]
  %s8 = sld [smem:[#allocation0]]
  $region38: #{critic_forward.1} parent=0
    _
  %s10 = ssub.s32 1, %s8
  %s11 = scalar_select 0, %s10, %s8
  %12 = sst [smem:[#allocation2]] %s6
  // Predicated region
  $region2: #{critic_forward.1} parent=0 // pred_check
    _
  $region3: #{critic_forward.1} parent=0 // pred_check_branch
    %14 = sbr.rel (0) target = $region5
  $region4: #{critic_forward.1} parent=0 // pred_region
    _
  $region5: #{critic_forward.1} parent=0 // pred_fallthru
    _
  // Predicated region
  $region6: #{critic_forward.1} parent=0 // pred_check
    _
  $region7: #{critic_forward.1} parent=0 // pred_check_branch
    %16 = sbr.rel (0) target = $region9
  $region8: #{critic_forward.1} parent=0 // pred_region
    _
  $region9: #{critic_forward.1} parent=0 // pred_fallthru
    _
  // Predicated region
  $region10: #{critic_forward.1} parent=0 // pred_check
    _
  $region11: #{critic_forward.1} parent=0 // pred_check_branch
    %18 = sbr.rel (0) target = $region13
  $region12: #{critic_forward.1} parent=0 // pred_region
    _
  $region13: #{critic_forward.1} parent=0 // pred_fallthru
    _
  // Predicated region
  $region14: #{critic_forward.1} parent=0 // pred_check
    _
  $region15: #{critic_forward.1} parent=0 // pred_check_branch
    %20 = sbr.rel (0) target = $region17
  $region16: #{critic_forward.1} parent=0 // pred_region
    _
  $region17: #{critic_forward.1} parent=0 // pred_fallthru
    _
  // Predicated region
  $region18: #{critic_forward.1} parent=0 // pred_check
    _
  $region19: #{critic_forward.1} parent=0 // pred_check_branch
    %22 = sbr.rel (0) target = $region21
  $region20: #{critic_forward.1} parent=0 // pred_region
    _
  $region21: #{critic_forward.1} parent=0 // pred_fallthru
    _
  // Predicated region
  $region22: #{critic_forward.1} parent=0 // pred_check
    _
  $region23: #{critic_forward.1} parent=0 // pred_check_branch
    %24 = sbr.rel (0) target = $region25
  $region24: #{critic_forward.1} parent=0 // pred_region
    _
  $region25: #{critic_forward.1} parent=0 // pred_fallthru
    _
  // Predicated region
  $region26: #{critic_forward.1} parent=0 // pred_check
    _
  $region27: #{critic_forward.1} parent=0 // pred_check_branch
    %26 = sbr.rel (0) target = $region29
  $region28: #{critic_forward.1} parent=0 // pred_region
    _
  $region29: #{critic_forward.1} parent=0 // pred_fallthru
    _
  %v28 = vld [vmem:[%s0] sm:$0xff]
  %v29 = vld [vmem:[%s0 + $0x8] sm:$0xff]
  %v30 = vld [vmem:[%s0 + $0x10] sm:$0xff]
  %v31 = vld [vmem:[%s0 + $0x18] sm:$0xff]
  %v32 = vld [vmem:[%s0 + $0x20] sm:$0xff]
  %v33 = vld [vmem:[%s0 + $0x28] sm:$0xff]
  %v34 = vld [vmem:[%s0 + $0x30] sm:$0xff]
  %v35 = vld [vmem:[%s0 + $0x38] sm:$0xff]
  %v36 = vld [vmem:[%s0 + $0x40] sm:$0xff]
  %v37 = vld [vmem:[%s0 + $0x48] sm:$0xff]
  %v38 = vld [vmem:[%s0 + $0x50] sm:$0xff]
  %v39 = vld [vmem:[%s0 + $0x58] sm:$0xff]
  %v40 = vld [vmem:[%s0 + $0x60] sm:$0xff]
  %v41 = vld [vmem:[%s0 + $0x68] sm:$0xff]
  %v42 = vld [vmem:[%s0 + $0x70] sm:$0xff]
  %v43 = vld [vmem:[%s0 + $0x78] sm:$0xff]
  %v44 = vpack.c.bf16 %v29, %v28
  %v45 = vpack.c.bf16 %v31, %v30
  %v46 = vpack.c.bf16 %v33, %v32
  %v47 = vpack.c.bf16 %v35, %v34
  %v48 = vpack.c.bf16 %v37, %v36
  %v49 = vpack.c.bf16 %v39, %v38
  %v50 = vpack.c.bf16 %v41, %v40
  %v51 = vpack.c.bf16 %v43, %v42
  %v52 = vld [vmem:[%s1] sm:$0xf]
  %v53 = vld [vmem:[%s1 + $0x4] sm:$0xf]
  %v54 = vld [vmem:[%s1 + $0x8] sm:$0xf]
  %v55 = vld [vmem:[%s1 + $0xc] sm:$0xf]
  %v56 = vld [vmem:[%s2] sm:$0xff]
  %v57 = vld [vmem:[%s2 + $0x8] sm:$0xff]
  %v58 = vld [vmem:[%s2 + $0x10] sm:$0xff]
  %v59 = vld [vmem:[%s2 + $0x18] sm:$0xff]
  %61 = vset.pattern.permute.xlu0 0
  %62 = vperm.xlu0 %61, %v56
  %v63 = vpop.permute.xlu0 %62
  %66 = vset.pattern.permute.xlu0 0
  %67 = vperm.xlu0 %66, %v57
  %v68 = vpop.permute.xlu0 %67
  %71 = vset.pattern.permute.xlu0 0
  %72 = vperm.xlu0 %71, %v58
  %v73 = vpop.permute.xlu0 %72
  %76 = vset.pattern.permute.xlu0 0
  %77 = vperm.xlu0 %76, %v59
  %v78 = vpop.permute.xlu0 %77
  %v84 = vunpack.c.l.b16 %v52
  %v85 = vunpack.c.l.b16 %v53
  %v86 = vunpack.c.l.b16 %v54
  %v87 = vunpack.c.l.b16 %v55
  %v88 = vpack.c.b16 %v85, %v84
  %v89 = vpack.c.b16 %v87, %v86
  %vm90 = vcmask 130048
  %v92 = vsel %vm90, %v88, 0
  %v95 = vsel %vm90, %v89, 0
  %v98 = vsel %vm90, %v44, 0
  %v101 = vsel %vm90, %v45, 0
  %v104 = vsel %vm90, %v46, 0
  %v107 = vsel %vm90, %v47, 0
  %v110 = vsel %vm90, %v48, 0
  %v113 = vsel %vm90, %v49, 0
  %v116 = vsel %vm90, %v50, 0
  %v119 = vsel %vm90, %v51, 0
  %121 = vmatpush.bf16.xpose.msra.mxu0 %v119
  %122 = vmatpush.bf16.xpose.msra.mxu0 %v116
  %123 = vmatpush.bf16.xpose.msra.mxu0 %v113
  %124 = vmatpush.bf16.xpose.msra.mxu0 %v110
  %125 = vmatpush.bf16.xpose.msra.mxu0 %v107
  %126 = vmatpush.bf16.xpose.msra.mxu0 %v104
  %127 = vmatpush.bf16.xpose.msra.mxu0 %v101
  %128 = vmatpush.bf16.xpose.msra.mxu0 %v98
  %129 = vmatmul.bf16.gmra.mxu0 %v92
  %v130 = vpop.f32.mrf.mxu0
  %v131 = vadd.f32 %v63, %v130
  %v132 = vpop.f32.mrf.mxu0
  %v133 = vadd.f32 %v68, %v132
  %134 = vmatmul.bf16.gmra.mxu0 %v95
  %v135 = vpop.f32.mrf.mxu0
  %v136 = vadd.f32 %v73, %v135
  %v137 = vpop.f32.mrf.mxu0
  %v138 = vadd.f32 %v78, %v137
  %139 = vdwg.mxu0
  %v140 = vtanh.pop %v131
  %v141 = vtanh.pop %v133
  %v142 = vtanh.pop %v136
  %v143 = vtanh.pop %v138
  %v144 = vld [vmem:[%s3] sm:$0xf]
  %v145 = vld [vmem:[%s3 + $0x4] sm:$0xf]
  %v146 = vld [vmem:[%s3 + $0x8] sm:$0xf]
  %v147 = vld [vmem:[%s3 + $0xc] sm:$0xf]
  %v148 = vpack.c.bf16 %v141, %v140
  %v149 = vpack.c.bf16 %v143, %v142
  %v150 = vld [vmem:[%s4] sm:$0xff]
  %v151 = vld [vmem:[%s4 + $0x8] sm:$0xff]
  %v152 = vld [vmem:[%s4 + $0x10] sm:$0xff]
  %v153 = vld [vmem:[%s4 + $0x18] sm:$0xff]
  %155 = vset.pattern.permute.xlu0 0
  %156 = vperm.xlu0 %155, %v150
  %v157 = vpop.permute.xlu0 %156
  %160 = vset.pattern.permute.xlu0 0
  %161 = vperm.xlu0 %160, %v151
  %v162 = vpop.permute.xlu0 %161
  %165 = vset.pattern.permute.xlu0 0
  %166 = vperm.xlu0 %165, %v152
  %v167 = vpop.permute.xlu0 %166
  %170 = vset.pattern.permute.xlu0 0
  %171 = vperm.xlu0 %170, %v153
  %v172 = vpop.permute.xlu0 %171
  %v178 = vunpack.c.l.b16 %v144
  %v179 = vunpack.c.l.b16 %v145
  %v180 = vunpack.c.l.b16 %v146
  %v181 = vunpack.c.l.b16 %v147
  %v182 = vpack.c.b16 %v179, %v178
  %v183 = vpack.c.b16 %v181, %v180
  %vm184 = vcmask 261120
  %v186 = vsel %vm184, %v182, 0
  %v189 = vsel %vm184, %v183, 0
  %191 = vmatpush.bf16.msra.mxu0 0
  %192 = vmatpush.bf16.msra.mxu0 0
  %193 = vmatpush.bf16.msra.mxu0 0
  %194 = vmatpush.bf16.msra.mxu0 0
  %195 = vmatpush.bf16.msra.mxu0 0
  %196 = vmatpush.bf16.msra.mxu0 0
  %197 = vmatpush.bf16.msra.mxu0 %v149
  %198 = vmatpush.bf16.msra.mxu0 %v148
  %199 = vmatmul.bf16.gmra.mxu0 %v186
  %v200 = vpop.f32.mrf.mxu0
  %v201 = vadd.f32 %v157, %v200
  %v202 = vpop.f32.mrf.mxu0
  %v203 = vadd.f32 %v162, %v202
  %204 = vmatmul.bf16.gmra.mxu0 %v189
  %v205 = vpop.f32.mrf.mxu0
  %v206 = vadd.f32 %v167, %v205
  %v207 = vpop.f32.mrf.mxu0
  %v208 = vadd.f32 %v172, %v207
  %209 = vdwg.mxu0
  %v210 = vtanh.pop %v201
  %v211 = vtanh.pop %v203
  %v212 = vtanh.pop %v206
  %v213 = vtanh.pop %v208
  %v214 = vld [vmem:[%s5] sm:$0xff]
  %v215 = vld [vmem:[%s5 + $0x8] sm:$0xff]
  %v216 = vld [vmem:[%s5 + $0x10] sm:$0xff]
  %v217 = vld [vmem:[%s5 + $0x18] sm:$0xff]
  %219 = vset.pattern.permute.xlu0 0
  %220 = vperm.xlu0 %219, %v214
  %v221 = vpop.permute.xlu0 %220
  %224 = vset.pattern.permute.xlu0 0
  %225 = vperm.xlu0 %224, %v215
  %v226 = vpop.permute.xlu0 %225
  %229 = vset.pattern.permute.xlu0 0
  %230 = vperm.xlu0 %229, %v216
  %v231 = vpop.permute.xlu0 %230
  %234 = vset.pattern.permute.xlu0 0
  %235 = vperm.xlu0 %234, %v217
  %v236 = vpop.permute.xlu0 %235
  %v238 = vmul.f32 %v210, %v221
  %v239 = vmul.f32 %v211, %v226
  %v240 = vmul.f32 %v212, %v231
  %v241 = vmul.f32 %v213, %v236
  %v242 = vadd.f32 %v238, %v239
  %v243 = vadd.f32 %v242, %v240
  %v244 = vadd.f32 %v243, %v241
  %v245 = vrot.slane %v244, 4
  %v246 = vadd.f32 %v244, %v245
  %v247 = vrot.slane %v246, 2
  %v248 = vadd.f32 %v246, %v247
  %v249 = vrot.slane %v248, 1
  %v250 = vadd.f32 %v248, %v249
  %s251 = sld [smem:[#allocation2]]
  %v252 = vstv %s251
  %v253 = vadd.f32 %v250, %v252
  %254 = vst [vmem:[%s7] sm:$0x1] %v253
  // Predicated region
  $region30: #{critic_forward.1} parent=0 // pred_check
    _
  $region31: #{critic_forward.1} parent=0 // pred_check_branch
    %256 = sbr.rel (0) target = $region33
  $region32: #{critic_forward.1} parent=0 // pred_region
    _
  $region33: #{critic_forward.1} parent=0 // pred_fallthru
    _
  // Predicated region
  $region34: #{critic_forward.1} parent=0 // pred_check
    _
  $region35: #{critic_forward.1} parent=0 // pred_check_branch
    %258 = sbr.rel (0) target = $region37
  $region36: #{critic_forward.1} parent=0 // pred_region
    _
  $region37: #{critic_forward.1} parent=0 // pred_fallthru
    _

</llo_original>
